<compile_context>
chip_gen: v7x
topology: tpu7x:2x2x1
jax: 0.10.0
libtpu: 0.0.40
codegen_flags: <defaults>
</compile_context>

<pallas_src>
import math
import functools

import jax
import jax.numpy as jnp
from jax import lax
from jax.experimental import pallas as pl
from jax.experimental.pallas import tpu as pltpu


def _pick_sublane_tile(total, cap):
    """Largest multiple-of-8 divisor of `total` <= cap, else `total` itself
    (a block equal to the full dimension always satisfies the (8, 128) rule)."""
    best = None
    t = 8
    while t <= min(cap, total):
        if total % t == 0:
            best = t
        t += 8
    return best if best is not None else total


def _pick_lane_tile(total, cap):
    """Largest multiple-of-128 divisor of `total` <= cap, else `total` itself."""
    best = None
    t = 128
    while t <= min(cap, total):
        if total % t == 0:
            best = t
        t += 128
    return best if best is not None else total


def _vmem_limit(est_bytes):
    """Explicit scoped-VMEM budget: the defaults (16 MiB v5e / 32 MiB v6e+) reject
    otherwise-fine tilings.  2x headroom, floor 32 MiB, cap 64 MiB so the same value
    is valid on v7x (64 MiB physical per TensorCore)."""
    return int(min(max(2 * est_bytes, 32 * 2 ** 20), 64 * 2 ** 20))


def _q_tile_cap():
    """256-row q tiles fill the 256-wide MXU on v6e/v7x; v5e's MXU is 128-wide so
    larger q tiles only add vreg/VMEM pressure there."""
    try:
        kind = jax.devices()[0].device_kind.lower()
    except Exception:
        return 256
    if "v5 lite" in kind or "v5e" in kind or "v5litepod" in kind:
        return 128
    return 256


# ---------------------------------------------------------------------------------------
# Kernel 1: fused QKV projection with a tiled reduction over d_in, head-major outputs.
# grid = (batch, row_tile, k_tile); the (tkk, 3*d_out) weight tile streams over the
# innermost reduction axis so the full (d, 3d) weight is never resident in VMEM.
# ---------------------------------------------------------------------------------------
def _qkv_proj_kernel(x_ref, wqkv_ref, q_ref, k_ref, v_ref, acc_ref, *,
                     d_out, num_heads, head_dim):
    kk = pl.program_id(2)

    @pl.when(kk == 0)
    def _():
        acc_ref[...] = jnp.zeros_like(acc_ref)

    # (tn, tkk) x (tkk, 3*d_out) partial product, f32 accumulation on the MXU.
    acc_ref[...] += jnp.dot(x_ref[0], wqkv_ref[...],
                            preferred_element_type=jnp.float32)

    @pl.when(kk == pl.num_programs(2) - 1)
    def _():
        acc = acc_ref[...]
        # Head-major stores: (tn, hd) column slices of the accumulator.  For hd < 128
        # these are lane-masked / relayout stores, traded against removing a full HBM
        # read+write pass of Q/K/V between the two kernels (biggest relative win on v5e).
        for h in range(num_heads):
            lo = h * head_dim
            q_ref[0, h] = acc[:, lo:lo + head_dim].astype(q_ref.dtype)
            k_ref[0, h] = acc[:, d_out + lo:d_out + lo + head_dim].astype(k_ref.dtype)
            v_ref[0, h] = acc[:, 2 * d_out + lo:2 * d_out + lo + head_dim].astype(v_ref.dtype)


# ---------------------------------------------------------------------------------------
# Kernel 2: flash-style causal attention + fused output projection over a flattened,
# scalar-prefetched triangular grid.  grid = (batch, step); step walks only contributing
# (q_tile, head, kv_tile) triples, ordered q_tile-major then head then kv (so the shared
# out-projection accumulator and the output block stay resident per q tile).
# ---------------------------------------------------------------------------------------
def _flash_attn_outproj_kernel(qi_ref, hi_ref, ki_ref,
                               q_ref, k_ref, v_ref, wot_ref, bo_ref, o_ref,
                               m_scr, l_scr, acc_scr, out_scr, *,
                               tq, tk, num_heads, mxu_dtype, approx_recip):
    t = pl.program_id(1)
    qi = qi_ref[t]
    h = hi_ref[t]
    ki = ki_ref[t]
    kmax = ((qi + 1) * tq - 1) // tk            # last contributing kv block of this q tile

    # Seed the fused out-projection accumulator with the bias once per q tile.
    @pl.when(jnp.logical_and(h == 0, ki == 0))
    def _():
        out_scr[...] = jnp.broadcast_to(bo_ref[...].astype(jnp.float32), out_scr.shape)

    # Reset online-softmax state at the start of every head's KV sweep.
    @pl.when(ki == 0)
    def _():
        m_scr[...] = jnp.full(m_scr.shape, -jnp.inf, dtype=jnp.float32)
        l_scr[...] = jnp.zeros(l_scr.shape, dtype=jnp.float32)
        acc_scr[...] = jnp.zeros(acc_scr.shape, dtype=jnp.float32)

    q = q_ref[0, 0]                              # (tq, hd); 1/sqrt(hd) pre-folded into W_q
    k = k_ref[0, 0]                              # (tk, hd)
    v = v_ref[0, 0]                              # (tk, hd)
    # scores = q @ k.T by contracting the hd axes (no in-kernel transpose).
    s = lax.dot_general(q, k, (((1,), (1,)), ((), ())),
                        preferred_element_type=jnp.float32)   # (tq, tk) f32

    def online_update(s_blk):
        m_prev = m_scr[...]
        m_new = jnp.maximum(m_prev, jnp.max(s_blk, axis=-1, keepdims=True))
        alpha = jnp.exp(m_prev - m_new)
        p = jnp.exp(s_blk - m_new)               # softmax math stays in f32 (-1e30 safe)
        l_scr[...] = alpha * l_scr[...] + jnp.sum(p, axis=-1, keepdims=True)
        acc_scr[...] = alpha * acc_scr[...] + jnp.dot(
            p.astype(mxu_dtype), v, preferred_element_type=jnp.float32)
        m_scr[...] = m_new

    # Only diagonal-straddling blocks pay for the iota/compare/where mask; blocks fully
    # below the diagonal take the unmasked path (VPU relief on interior kv steps).
    needs_mask = (ki + 1) * tk > qi * tq + 1

    @pl.when(needs_mask)
    def _():
        rows = qi * tq + lax.broadcasted_iota(jnp.int32, (tq, tk), 0)
        cols = ki * tk + lax.broadcasted_iota(jnp.int32, (tq, tk), 1)
        online_update(jnp.where(cols > rows, -1e30, s))

    @pl.when(jnp.logical_not(needs_mask))
    def _():
        online_update(s)

    # End of this head's KV sweep: normalise (reciprocal on the EUP slot) and fold this
    # head's slice of the output projection into the shared (tq, d_out) accumulator.
    @pl.when(ki == kmax)
    def _():
        ctx = acc_scr[...] * pl.reciprocal(l_scr[...], approx=approx_recip)   # (tq, hd)
        out_scr[...] += jnp.dot(ctx.astype(mxu_dtype), wot_ref[...],
                                preferred_element_type=jnp.float32)
        # TODO(synk): a single K=d_out matmul per q tile (scatter each head's ctx into a
        # (tq, d_out) scratch column slice first) would fill the MXU better than per-head
        # K=head_dim matmuls, but requires dynamic lane-offset stores (head index is a
        # runtime scalar here); kept per-head for lowering robustness.

    # Last head, last kv block: the (tq, d_out) output tile is complete -> store once.
    @pl.when(jnp.logical_and(h == num_heads - 1, ki == kmax))
    def _():
        o_ref[0] = out_scr[...].astype(o_ref.dtype)


# ---------------------------------------------------------------------------------------
# Wrapper
# ---------------------------------------------------------------------------------------
def mha_einsum_forward(x, w_query, w_key, w_value, w_out, b_out, *, num_heads,
                       mxu_dtype=jnp.bfloat16, approx_recip=True):
    b, n, d_in = x.shape
    d_out = w_query.shape[0]
    assert d_in == d_out, "MHAEinsum's einsum contraction requires d_in == d_out"
    assert d_out % num_heads == 0
    head_dim = d_out // num_heads
    assert head_dim % 8 == 0 or head_dim == d_out, \
        "head_dim must be a multiple of 8 (TPU sublane) for the W_out.T row blocking"
    out_dtype = x.dtype
    isz = jnp.dtype(mxu_dtype).itemsize

    # Host-side weight prep (zero run-time cost): fuse QKV, fold the 1/sqrt(hd) score
    # scale into W_q, pre-transpose W_out (nn.Linear: y = ctx @ W.T + b), cast operands.
    scale = 1.0 / math.sqrt(head_dim)
    w_qkv = jnp.concatenate([w_query * scale, w_key, w_value], axis=1).astype(mxu_dtype)
    w_out_t = w_out.T.astype(mxu_dtype)
    b_out2d = b_out.reshape(1, d_out).astype(jnp.float32)
    x_c = x.astype(mxu_dtype)

    # --- Kernel 1: fused QKV projection, reduction-tiled weight, head-major outputs ---
    tn_cap = 512 if d_out <= 2048 else 256        # keep the f32 (tn, 3d) acc bounded
    tn = _pick_sublane_tile(n, tn_cap)
    tkk = _pick_lane_tile(d_in, 512)
    nkk = d_in // tkk
    assert n % tn == 0 and d_in % tkk == 0

    est1 = (2 * tn * tkk * isz                    # x tile (double-buffered)
            + 2 * tkk * 3 * d_out * isz           # weight tile (double-buffered)
            + tn * 3 * d_out * 4                  # f32 accumulator scratch
            + 3 * 2 * tn * d_out * isz)           # Q/K/V output blocks (double-buffered)
    # NOTE: when nkk == 1 the weight block is grid-invariant and could be single-buffered
    # (pipeline_mode=pl.Buffered(1)) to halve its footprint; left at the default for
    # lowering robustness - the explicit vmem_limit below covers the budget instead.

    qkv_kernel = functools.partial(_qkv_proj_kernel, d_out=d_out,
                                   num_heads=num_heads, head_dim=head_dim)
    q_h, k_h, v_h = pl.pallas_call(
        qkv_kernel,
        out_shape=tuple(jax.ShapeDtypeStruct((b, num_heads, n, head_dim), mxu_dtype)
                        for _ in range(3)),
        grid_spec=pltpu.PrefetchScalarGridSpec(
            num_scalar_prefetch=0,
            grid=(b, n // tn, nkk),
            in_specs=[
                pl.BlockSpec((1, tn, tkk), lambda bi, ni, kk: (bi, ni, kk)),
                pl.BlockSpec((tkk, 3 * d_out), lambda bi, ni, kk: (kk, 0)),
            ],
            out_specs=tuple(
                pl.BlockSpec((1, num_heads, tn, head_dim),
                             lambda bi, ni, kk: (bi, 0, ni, 0))
                for _ in range(3)),
            scratch_shapes=[pltpu.VMEM((tn, 3 * d_out), jnp.float32)],
        ),
        compiler_params=pltpu.CompilerParams(
            dimension_semantics=("parallel", "parallel", "arbitrary"),
            vmem_limit_bytes=_vmem_limit(est1)),
    )(x_c, w_qkv)

    # --- Kernel 2: flash attention + fused output projection (triangular grid) ---
    tq = _pick_sublane_tile(n, _q_tile_cap())     # 256 on v6e/v7x, 128 on v5e
    tk = _pick_sublane_tile(n, 128)               # keep the (tq, tk) f32 score tile in vregs
    nq = n // tq

    # Flattened causal grid (scalar-prefetched): enumerate only contributing
    # (q_tile, head, kv_tile) triples - no per-step overhead wasted on skipped
    # above-diagonal blocks.  Order: q_tile-major, then head, then kv.
    qs, hs, ks = [], [], []
    for qi in range(nq):
        kmax = ((qi + 1) * tq - 1) // tk
        for h in range(num_heads):
            for ki in range(kmax + 1):
                qs.append(qi)
                hs.append(h)
                ks.append(ki)
    qi_arr = jnp.asarray(qs, dtype=jnp.int32)
    hi_arr = jnp.asarray(hs, dtype=jnp.int32)
    ki_arr = jnp.asarray(ks, dtype=jnp.int32)
    n_steps = len(qs)

    est2 = (2 * tq * head_dim * isz                               # q block
            + 2 * 2 * tk * head_dim * isz                         # k, v blocks
            + 2 * head_dim * d_out * isz                          # W_out.T row block
            + 2 * d_out * 4                                       # bias
            + 2 * tq * d_out * jnp.dtype(out_dtype).itemsize      # output block
            + 2 * tq * 4 + tq * head_dim * 4 + tq * d_out * 4)    # VMEM scratch

    attn_kernel = functools.partial(
        _flash_attn_outproj_kernel, tq=tq, tk=tk, num_heads=num_heads,
        mxu_dtype=mxu_dtype, approx_recip=approx_recip)

    return pl.pallas_call(
        attn_kernel,
        out_shape=jax.ShapeDtypeStruct((b, n, d_out), out_dtype),
        grid_spec=pltpu.PrefetchScalarGridSpec(
            num_scalar_prefetch=3,
            grid=(b, n_steps),
            in_specs=[
                pl.BlockSpec((1, 1, tq, head_dim),
                             lambda bi, t, qi_r, hi_r, ki_r: (bi, hi_r[t], qi_r[t], 0)),
                pl.BlockSpec((1, 1, tk, head_dim),
                             lambda bi, t, qi_r, hi_r, ki_r: (bi, hi_r[t], ki_r[t], 0)),
                pl.BlockSpec((1, 1, tk, head_dim),
                             lambda bi, t, qi_r, hi_r, ki_r: (bi, hi_r[t], ki_r[t], 0)),
                pl.BlockSpec((head_dim, d_out),                    # W_out.T rows of head h
                             lambda bi, t, qi_r, hi_r, ki_r: (hi_r[t], 0)),
                pl.BlockSpec((1, d_out),                           # bias
                             lambda bi, t, qi_r, hi_r, ki_r: (0, 0)),
            ],
            out_specs=pl.BlockSpec(
                (1, tq, d_out),
                lambda bi, t, qi_r, hi_r, ki_r: (bi, qi_r[t], 0)),
            scratch_shapes=[
                pltpu.VMEM((tq, 1), jnp.float32),            # running max m
                pltpu.VMEM((tq, 1), jnp.float32),            # running denominator l
                pltpu.VMEM((tq, head_dim), jnp.float32),     # per-head context accumulator
                pltpu.VMEM((tq, d_out), jnp.float32),        # fused out-projection accumulator
            ],
        ),
        compiler_params=pltpu.CompilerParams(
            dimension_semantics=("parallel", "arbitrary"),
            vmem_limit_bytes=_vmem_limit(est2)),
    )(qi_arr, hi_arr, ki_arr, q_h, k_h, v_h, w_out_t, b_out2d)


# ---------------------------------------------------------------------------------------
# Pure-JAX reference (f32)
# ---------------------------------------------------------------------------------------
def _reference(x, wq, wk, wv, wo, bo, num_heads):
    b, n, d = x.shape
    hd = d // num_heads
    q = jnp.einsum('bnd,di->bni', x, wq)
    k = jnp.einsum('bnd,di->bni', x, wk)
    v = jnp.einsum('bnd,di->bni', x, wv)
    q = q.reshape(b, n, num_heads, hd).transpose(0, 2, 1, 3)
    k = k.reshape(b, n, num_heads, hd).transpose(0, 2, 1, 3)
    v = v.reshape(b, n, num_heads, hd).transpose(0, 2, 1, 3)
    scores = jnp.einsum('bhnd,bhmd->bhnm', q, k) / math.sqrt(hd)
    mask = jnp.triu(jnp.ones((n, n), dtype=bool), k=1)
    scores = jnp.where(mask[None, None], -jnp.inf, scores)
    attn = jax.nn.softmax(scores, axis=-1)
    ctx = jnp.einsum('bhnm,bhmd->bhnd', attn, v)
    ctx = ctx.transpose(0, 2, 1, 3).reshape(b, n, d)
    return ctx @ wo.T + bo


if __name__ == "__main__":
    # Small shapes consistent with the module (its einsum requires d_in == d_out).
    batch, seq = 2, 8
    d_in = d_out = 32
    num_heads = 4
    # context_length = 8, dropout = 0.0 -> full-length causal mask, dropout is identity.

    key = jax.random.PRNGKey(0)
    kx, kq, kk, kv, kw, kb = jax.random.split(key, 6)
    bound = 1.0 / math.sqrt(d_in)   # kaiming_uniform_(a=sqrt(5)) bound (1/sqrt(fan_in))
    w_query = jax.random.uniform(kq, (d_out, d_in), jnp.float32, -bound, bound)
    w_key = jax.random.uniform(kk, (d_out, d_in), jnp.float32, -bound, bound)
    w_value = jax.random.uniform(kv, (d_out, d_in), jnp.float32, -bound, bound)
    w_out = jax.random.uniform(kw, (d_out, d_out), jnp.float32, -bound, bound)   # out_proj.weight
    b_out = jax.random.uniform(kb, (d_out,), jnp.float32, -bound, bound)         # out_proj.bias
    x = jax.random.normal(kx, (batch, seq, d_in), jnp.float32)

    ref = _reference(x, w_query, w_key, w_value, w_out, b_out, num_heads)

    # f32 MXU path with exact reciprocal: validates the algorithm tightly.
    out_f32 = jax.block_until_ready(
        mha_einsum_forward(x, w_query, w_key, w_value, w_out, b_out,
                           num_heads=num_heads, mxu_dtype=jnp.float32,
                           approx_recip=False))
    assert out_f32.shape == (batch, seq, d_out)
    assert jnp.allclose(out_f32, ref, atol=2e-3, rtol=2e-3), "f32 path mismatch vs reference"

    # Default fast path: bf16 MXU operands, f32 accumulation / softmax, approx reciprocal.
    out_bf16 = jax.block_until_ready(
        mha_einsum_forward(x, w_query, w_key, w_value, w_out, b_out,
                           num_heads=num_heads, mxu_dtype=jnp.bfloat16))
    assert out_bf16.shape == (batch, seq, d_out)
    assert jnp.allclose(out_bf16, ref, atol=3e-2, rtol=3e-2), "bf16 path mismatch vs reference"

    print("KERNEL_OK")
</pallas_src>

<mosaic_0001>
module attributes {stable_mosaic.version = 11 : i64} {
  func.func @_qkv_proj_kernel(%arg0: i32, %arg1: i32, %arg2: i32, %arg3: memref<1x8x32xf32, #tpu.memory_space<vmem>>, %arg4: memref<32x96xf32, #tpu.memory_space<vmem>>, %arg5: memref<1x4x8x8xf32, #tpu.memory_space<vmem>>, %arg6: memref<1x4x8x8xf32, #tpu.memory_space<vmem>>, %arg7: memref<1x4x8x8xf32, #tpu.memory_space<vmem>>, %arg8: memref<8x96xf32, #tpu.memory_space<vmem>>) attributes {dimension_semantics = [#tpu.dimension_semantics<parallel>, #tpu.dimension_semantics<parallel>, #tpu.dimension_semantics<arbitrary>], iteration_bounds = array<i64: 2, 1, 1>, scalar_prefetch = 0 : i64, scratch_operands = 1 : i64, tpu.core_type = #tpu.core_type<tc>, window_params = [{transform_indices = @transform_0, window_bounds = array<i64: 1, 8, 32>}, {transform_indices = @transform_1, window_bounds = array<i64: 32, 96>}, {transform_indices = @transform_2, window_bounds = array<i64: 1, 4, 8, 8>}, {transform_indices = @transform_3, window_bounds = array<i64: 1, 4, 8, 8>}, {transform_indices = @transform_4, window_bounds = array<i64: 1, 4, 8, 8>}]} {
    %c0_i32 = arith.constant 0 : i32
    %0 = arith.cmpi eq, %arg2, %c0_i32 : i32
    %1 = arith.extui %0 : i1 to i32
    %c0_i32_0 = arith.constant 0 : i32
    %2 = arith.cmpi ne, %1, %c0_i32_0 : i32
    scf.if %2 {
      %cst_11 = arith.constant 0.000000e+00 : f32
      %13 = vector.broadcast %cst_11 : f32 to vector<8x96xf32>
      %c0_12 = arith.constant 0 : index
      %c0_13 = arith.constant 0 : index
      %14 = vector.load %arg8[%c0_12, %c0_13] : memref<8x96xf32, #tpu.memory_space<vmem>>, vector<8x96xf32>
      tpu.vector_store %arg8[%c0_12, %c0_13], %13 {strides = array<i32>} : memref<8x96xf32, #tpu.memory_space<vmem>>, vector<8x96xf32>,
    } else {
    }
    %c0 = arith.constant 0 : index
    %c0_1 = arith.constant 0 : index
    %3 = vector.load %arg8[%c0, %c0_1] : memref<8x96xf32, #tpu.memory_space<vmem>>, vector<8x96xf32>
    %c0_2 = arith.constant 0 : index
    %c0_3 = arith.constant 0 : index
    %c0_4 = arith.constant 0 : index
    %4 = vector.load %arg3[%c0_2, %c0_3, %c0_4] : memref<1x8x32xf32, #tpu.memory_space<vmem>>, vector<1x8x32xf32>
    %5 = vector.shape_cast %4 : vector<1x8x32xf32> to vector<8x32xf32>
    %c0_5 = arith.constant 0 : index
    %c0_6 = arith.constant 0 : index
    %6 = vector.load %arg4[%c0_5, %c0_6] : memref<32x96xf32, #tpu.memory_space<vmem>>, vector<32x96xf32>
    %cst = arith.constant dense<0.000000e+00> : vector<8x96xf32>
    %7 = tpu.matmul %5, %6, %cst {dimension_numbers = #tpu.dot_dimension_numbers<[1], [0], [0], [1], [0, 0, 1, 1], [], []>} : vector<8x32xf32>, vector<32x96xf32>, vector<8x96xf32> -> vector<8x96xf32>
    %8 = arith.addf %3, %7 : vector<8x96xf32>
    %c0_7 = arith.constant 0 : index
    %c0_8 = arith.constant 0 : index
    %9 = vector.load %arg8[%c0_7, %c0_8] : memref<8x96xf32, #tpu.memory_space<vmem>>, vector<8x96xf32>
    tpu.vector_store %arg8[%c0_7, %c0_8], %8 {strides = array<i32>} : memref<8x96xf32, #tpu.memory_space<vmem>>, vector<8x96xf32>,
    %c0_i32_9 = arith.constant 0 : i32
    %10 = arith.cmpi eq, %arg2, %c0_i32_9 : i32
    %11 = arith.extui %10 : i1 to i32
    %c0_i32_10 = arith.constant 0 : i32
    %12 = arith.cmpi ne, %11, %c0_i32_10 : i32
    scf.if %12 {
      %c0_11 = arith.constant 0 : index
      %c0_12 = arith.constant 0 : index
      %13 = vector.load %arg8[%c0_11, %c0_12] : memref<8x96xf32, #tpu.memory_space<vmem>>, vector<8x96xf32>
      %14 = vector.extract_strided_slice %13 {offsets = [0, 0], sizes = [8, 8], strides = [1, 1]} : vector<8x96xf32> to vector<8x8xf32>
      %c0_13 = arith.constant 0 : index
      %c0_14 = arith.constant 0 : index
      %c0_15 = arith.constant 0 : index
      %c0_16 = arith.constant 0 : index
      %15 = vector.load %arg5[%c0_13, %c0_14, %c0_15, %c0_16] : memref<1x4x8x8xf32, #tpu.memory_space<vmem>>, vector<1x1x8x8xf32>
      %16 = vector.shape_cast %15 : vector<1x1x8x8xf32> to vector<8x8xf32>
      %17 = vector.shape_cast %14 : vector<8x8xf32> to vector<1x1x8x8xf32>
      tpu.vector_store %arg5[%c0_13, %c0_14, %c0_15, %c0_16], %17 {strides = array<i32>} : memref<1x4x8x8xf32, #tpu.memory_space<vmem>>, vector<1x1x8x8xf32>,
      %18 = vector.extract_strided_slice %13 {offsets = [0, 32], sizes = [8, 8], strides = [1, 1]} : vector<8x96xf32> to vector<8x8xf32>
      %c0_17 = arith.constant 0 : index
      %c0_18 = arith.constant 0 : index
      %c0_19 = arith.constant 0 : index
      %c0_20 = arith.constant 0 : index
      %19 = vector.load %arg6[%c0_17, %c0_18, %c0_19, %c0_20] : memref<1x4x8x8xf32, #tpu.memory_space<vmem>>, vector<1x1x8x8xf32>
      %20 = vector.shape_cast %19 : vector<1x1x8x8xf32> to vector<8x8xf32>
      %21 = vector.shape_cast %18 : vector<8x8xf32> to vector<1x1x8x8xf32>
      tpu.vector_store %arg6[%c0_17, %c0_18, %c0_19, %c0_20], %21 {strides = array<i32>} : memref<1x4x8x8xf32, #tpu.memory_space<vmem>>, vector<1x1x8x8xf32>,
      %22 = vector.extract_strided_slice %13 {offsets = [0, 64], sizes = [8, 8], strides = [1, 1]} : vector<8x96xf32> to vector<8x8xf32>
      %c0_21 = arith.constant 0 : index
      %c0_22 = arith.constant 0 : index
      %c0_23 = arith.constant 0 : index
      %c0_24 = arith.constant 0 : index
      %23 = vector.load %arg7[%c0_21, %c0_22, %c0_23, %c0_24] : memref<1x4x8x8xf32, #tpu.memory_space<vmem>>, vector<1x1x8x8xf32>
      %24 = vector.shape_cast %23 : vector<1x1x8x8xf32> to vector<8x8xf32>
      %25 = vector.shape_cast %22 : vector<8x8xf32> to vector<1x1x8x8xf32>
      tpu.vector_store %arg7[%c0_21, %c0_22, %c0_23, %c0_24], %25 {strides = array<i32>} : memref<1x4x8x8xf32, #tpu.memory_space<vmem>>, vector<1x1x8x8xf32>,
      %26 = vector.extract_strided_slice %13 {offsets = [0, 8], sizes = [8, 8], strides = [1, 1]} : vector<8x96xf32> to vector<8x8xf32>
      %c0_25 = arith.constant 0 : index
      %c1 = arith.constant 1 : index
      %c0_26 = arith.constant 0 : index
      %c0_27 = arith.constant 0 : index
      %27 = vector.load %arg5[%c0_25, %c1, %c0_26, %c0_27] : memref<1x4x8x8xf32, #tpu.memory_space<vmem>>, vector<1x1x8x8xf32>
      %28 = vector.shape_cast %27 : vector<1x1x8x8xf32> to vector<8x8xf32>
      %29 = vector.shape_cast %26 : vector<8x8xf32> to vector<1x1x8x8xf32>
      tpu.vector_store %arg5[%c0_25, %c1, %c0_26, %c0_27], %29 {strides = array<i32>} : memref<1x4x8x8xf32, #tpu.memory_space<vmem>>, vector<1x1x8x8xf32>,
      %30 = vector.extract_strided_slice %13 {offsets = [0, 40], sizes = [8, 8], strides = [1, 1]} : vector<8x96xf32> to vector<8x8xf32>
      %c0_28 = arith.constant 0 : index
      %c1_29 = arith.constant 1 : index
      %c0_30 = arith.constant 0 : index
      %c0_31 = arith.constant 0 : index
      %31 = vector.load %arg6[%c0_28, %c1_29, %c0_30, %c0_31] : memref<1x4x8x8xf32, #tpu.memory_space<vmem>>, vector<1x1x8x8xf32>
      %32 = vector.shape_cast %31 : vector<1x1x8x8xf32> to vector<8x8xf32>
      %33 = vector.shape_cast %30 : vector<8x8xf32> to vector<1x1x8x8xf32>
      tpu.vector_store %arg6[%c0_28, %c1_29, %c0_30, %c0_31], %33 {strides = array<i32>} : memref<1x4x8x8xf32, #tpu.memory_space<vmem>>, vector<1x1x8x8xf32>,
      %34 = vector.extract_strided_slice %13 {offsets = [0, 72], sizes = [8, 8], strides = [1, 1]} : vector<8x96xf32> to vector<8x8xf32>
      %c0_32 = arith.constant 0 : index
      %c1_33 = arith.constant 1 : index
      %c0_34 = arith.constant 0 : index
      %c0_35 = arith.constant 0 : index
      %35 = vector.load %arg7[%c0_32, %c1_33, %c0_34, %c0_35] : memref<1x4x8x8xf32, #tpu.memory_space<vmem>>, vector<1x1x8x8xf32>
      %36 = vector.shape_cast %35 : vector<1x1x8x8xf32> to vector<8x8xf32>
      %37 = vector.shape_cast %34 : vector<8x8xf32> to vector<1x1x8x8xf32>
      tpu.vector_store %arg7[%c0_32, %c1_33, %c0_34, %c0_35], %37 {strides = array<i32>} : memref<1x4x8x8xf32, #tpu.memory_space<vmem>>, vector<1x1x8x8xf32>,
      %38 = vector.extract_strided_slice %13 {offsets = [0, 16], sizes = [8, 8], strides = [1, 1]} : vector<8x96xf32> to vector<8x8xf32>
      %c0_36 = arith.constant 0 : index
      %c2 = arith.constant 2 : index
      %c0_37 = arith.constant 0 : index
      %c0_38 = arith.constant 0 : index
      %39 = vector.load %arg5[%c0_36, %c2, %c0_37, %c0_38] : memref<1x4x8x8xf32, #tpu.memory_space<vmem>>, vector<1x1x8x8xf32>
      %40 = vector.shape_cast %39 : vector<1x1x8x8xf32> to vector<8x8xf32>
      %41 = vector.shape_cast %38 : vector<8x8xf32> to vector<1x1x8x8xf32>
      tpu.vector_store %arg5[%c0_36, %c2, %c0_37, %c0_38], %41 {strides = array<i32>} : memref<1x4x8x8xf32, #tpu.memory_space<vmem>>, vector<1x1x8x8xf32>,
      %42 = vector.extract_strided_slice %13 {offsets = [0, 48], sizes = [8, 8], strides = [1, 1]} : vector<8x96xf32> to vector<8x8xf32>
      %c0_39 = arith.constant 0 : index
      %c2_40 = arith.constant 2 : index
      %c0_41 = arith.constant 0 : index
      %c0_42 = arith.constant 0 : index
      %43 = vector.load %arg6[%c0_39, %c2_40, %c0_41, %c0_42] : memref<1x4x8x8xf32, #tpu.memory_space<vmem>>, vector<1x1x8x8xf32>
      %44 = vector.shape_cast %43 : vector<1x1x8x8xf32> to vector<8x8xf32>
      %45 = vector.shape_cast %42 : vector<8x8xf32> to vector<1x1x8x8xf32>
      tpu.vector_store %arg6[%c0_39, %c2_40, %c0_41, %c0_42], %45 {strides = array<i32>} : memref<1x4x8x8xf32, #tpu.memory_space<vmem>>, vector<1x1x8x8xf32>,
      %46 = vector.extract_strided_slice %13 {offsets = [0, 80], sizes = [8, 8], strides = [1, 1]} : vector<8x96xf32> to vector<8x8xf32>
      %c0_43 = arith.constant 0 : index
      %c2_44 = arith.constant 2 : index
      %c0_45 = arith.constant 0 : index
      %c0_46 = arith.constant 0 : index
      %47 = vector.load %arg7[%c0_43, %c2_44, %c0_45, %c0_46] : memref<1x4x8x8xf32, #tpu.memory_space<vmem>>, vector<1x1x8x8xf32>
      %48 = vector.shape_cast %47 : vector<1x1x8x8xf32> to vector<8x8xf32>
      %49 = vector.shape_cast %46 : vector<8x8xf32> to vector<1x1x8x8xf32>
      tpu.vector_store %arg7[%c0_43, %c2_44, %c0_45, %c0_46], %49 {strides = array<i32>} : memref<1x4x8x8xf32, #tpu.memory_space<vmem>>, vector<1x1x8x8xf32>,
      %50 = vector.extract_strided_slice %13 {offsets = [0, 24], sizes = [8, 8], strides = [1, 1]} : vector<8x96xf32> to vector<8x8xf32>
      %c0_47 = arith.constant 0 : index
      %c3 = arith.constant 3 : index
      %c0_48 = arith.constant 0 : index
      %c0_49 = arith.constant 0 : index
      %51 = vector.load %arg5[%c0_47, %c3, %c0_48, %c0_49] : memref<1x4x8x8xf32, #tpu.memory_space<vmem>>, vector<1x1x8x8xf32>
      %52 = vector.shape_cast %51 : vector<1x1x8x8xf32> to vector<8x8xf32>
      %53 = vector.shape_cast %50 : vector<8x8xf32> to vector<1x1x8x8xf32>
      tpu.vector_store %arg5[%c0_47, %c3, %c0_48, %c0_49], %53 {strides = array<i32>} : memref<1x4x8x8xf32, #tpu.memory_space<vmem>>, vector<1x1x8x8xf32>,
      %54 = vector.extract_strided_slice %13 {offsets = [0, 56], sizes = [8, 8], strides = [1, 1]} : vector<8x96xf32> to vector<8x8xf32>
      %c0_50 = arith.constant 0 : index
      %c3_51 = arith.constant 3 : index
      %c0_52 = arith.constant 0 : index
      %c0_53 = arith.constant 0 : index
      %55 = vector.load %arg6[%c0_50, %c3_51, %c0_52, %c0_53] : memref<1x4x8x8xf32, #tpu.memory_space<vmem>>, vector<1x1x8x8xf32>
      %56 = vector.shape_cast %55 : vector<1x1x8x8xf32> to vector<8x8xf32>
      %57 = vector.shape_cast %54 : vector<8x8xf32> to vector<1x1x8x8xf32>
      tpu.vector_store %arg6[%c0_50, %c3_51, %c0_52, %c0_53], %57 {strides = array<i32>} : memref<1x4x8x8xf32, #tpu.memory_space<vmem>>, vector<1x1x8x8xf32>,
      %58 = vector.extract_strided_slice %13 {offsets = [0, 88], sizes = [8, 8], strides = [1, 1]} : vector<8x96xf32> to vector<8x8xf32>
      %c0_54 = arith.constant 0 : index
      %c3_55 = arith.constant 3 : index
      %c0_56 = arith.constant 0 : index
      %c0_57 = arith.constant 0 : index
      %59 = vector.load %arg7[%c0_54, %c3_55, %c0_56, %c0_57] : memref<1x4x8x8xf32, #tpu.memory_space<vmem>>, vector<1x1x8x8xf32>
      %60 = vector.shape_cast %59 : vector<1x1x8x8xf32> to vector<8x8xf32>
      %61 = vector.shape_cast %58 : vector<8x8xf32> to vector<1x1x8x8xf32>
      tpu.vector_store %arg7[%c0_54, %c3_55, %c0_56, %c0_57], %61 {strides = array<i32>} : memref<1x4x8x8xf32, #tpu.memory_space<vmem>>, vector<1x1x8x8xf32>,
    } else {
    }
    return
  }
  func.func @transform_0(%arg0: i32, %arg1: i32, %arg2: i32) -> (i32, i32, i32) {
    %c0_i32 = arith.constant 0 : i32
    return %arg0, %arg1, %arg2 : i32, i32, i32
  }
  func.func @transform_1(%arg0: i32, %arg1: i32, %arg2: i32) -> (i32, i32) {
    %c0_i32 = arith.constant 0 : i32
    %c0_i32_0 = arith.constant 0 : i32
    return %arg2, %c0_i32 : i32, i32
  }
  func.func @transform_2(%arg0: i32, %arg1: i32, %arg2: i32) -> (i32, i32, i32, i32) {
    %c0_i32 = arith.constant 0 : i32
    %c0_i32_0 = arith.constant 0 : i32
    %c0_i32_1 = arith.constant 0 : i32
    return %arg0, %c0_i32, %arg1, %c0_i32_0 : i32, i32, i32, i32
  }
  func.func @transform_3(%arg0: i32, %arg1: i32, %arg2: i32) -> (i32, i32, i32, i32) {
    %c0_i32 = arith.constant 0 : i32
    %c0_i32_0 = arith.constant 0 : i32
    %c0_i32_1 = arith.constant 0 : i32
    return %arg0, %c0_i32, %arg1, %c0_i32_0 : i32, i32, i32, i32
  }
  func.func @transform_4(%arg0: i32, %arg1: i32, %arg2: i32) -> (i32, i32, i32, i32) {
    %c0_i32 = arith.constant 0 : i32
    %c0_i32_0 = arith.constant 0 : i32
    %c0_i32_1 = arith.constant 0 : i32
    return %arg0, %c0_i32, %arg1, %c0_i32_0 : i32, i32, i32, i32
  }
}

</mosaic_0001>

<llo_original>
// kernel: tpu_custom_call.1
$region0: #{tpu_custom_call.1}
  #allocation0 [shape = 'u32[]', space=smem, size = 0x4, offset = 0x4, fixed_abs, tag = 'smem constant byte address 0x4 - core index']
  #allocation1 [shape = 'u32[144,128]{1,0:T(1,128)}', space=vmem, size = 0x12000, scoped, tag = 'internal scratch']
  #allocation2 [shape = 'f32[8,96]{1,0:T(8,128)}', space=vmem, size = 0x1000, scoped, tag = 'scratch operand']
  %s0 = inlined_call_operand.hbm [shape: f32[2,8,32], index: 0, kind: input, shape index: {}]
  %s1 = inlined_call_operand.hbm [shape: f32[32,96], index: 1, kind: input, shape index: {}]
  %s2 = inlined_call_operand.hbm [shape: f32[2,4,8,8], index: 2, kind: output, shape index: {0}]
  %s3 = inlined_call_operand.hbm [shape: f32[2,4,8,8], index: 3, kind: output, shape index: {1}]
  %s4 = inlined_call_operand.hbm [shape: f32[2,4,8,8], index: 4, kind: output, shape index: {2}]
  %5 = xla_tuple %s2, %s3, %s4
  %s6 = sld [smem:[#allocation0]]
  $region73: #{tpu_custom_call.1} parent=0
    _
  %s8 = ssub.s32 1, %s6
  %s9 = scalar_select 0, %s8, %s6
  $region1: #{tpu_custom_call.1} parent=0
    #allocation3 [shape = 'u8[8192]{0}', space=vmem, size = 0x2000, scoped, tag = 'input window, operand 0']
    #allocation4 [shape = 's32[2]{0}', space=sflag, size = 0x8, scoped, tag = 'scoped memory for tpu_custom_call.1']
    #allocation5 [shape = 's32[2]{0}', space=sflag, size = 0x8, scoped, tag = 'scoped memory for tpu_custom_call.1']
    #allocation6 [shape = 'u8[16384]{0}', space=vmem, size = 0x4000, scoped, tag = 'input window, operand 1, single buffered']
    #allocation7 [shape = 's32[1]{0}', space=sflag, size = 0x4, scoped, tag = 'scoped memory for tpu_custom_call.1']
    #allocation8 [shape = 'u8[32768]{0}', space=vmem, size = 0x8000, scoped, tag = 'output window, operand 0']
    #allocation9 [shape = 'u8[32768]{0}', space=vmem, size = 0x8000, scoped, tag = 'output window, operand 1']
    #allocation10 [shape = 's32[2]{0}', space=sflag, size = 0x8, scoped, tag = 'scoped memory for tpu_custom_call.1']
    #allocation11 [shape = 'u8[32768]{0}', space=vmem, size = 0x8000, scoped, tag = 'output window, operand 2']
    %10 = vsyncpa [#allocation4], 0
    %s11 = scalar_lea.sflag [#allocation4], 1
    %12 = vsyncpa %s11, 0
    %13 = vsyncpa [#allocation7], 0
    %14 = vsyncpa [#allocation5], 0
    %s15 = scalar_lea.sflag [#allocation5], 1
    %16 = vsyncpa %s15, 0
    %17 = vsyncpa [#allocation10], 0
    %s18 = scalar_lea.sflag [#allocation10], 1
    %19 = vsyncpa %s18, 0
    loop: start=0, step=1, limit=4
    $region2: #{tpu_custom_call.1} parent=1 // loop_pre_header
      _
    $region3: #{tpu_custom_call.1} parent=1 // loop_header
      %s21 = sphi 0, %s25
      %p22 = scmp.ge.s32.totalorder %s21, 4
      %s28 = sphi 0, %s47
      %s29 = sphi 0, %s43
      %s30 = sphi 0, %s39
      %s31 = sphi 0, %s28
      %s32 = sphi 0, %s29
      %s33 = sphi 0, %s30
      %s34 = sphi 0, %s31
      %s35 = sphi 0, %s32
      %s36 = sphi 0, %s33
      %s54 = sphi 0, %s56
      %s57 = sphi 0, %s54
      %s58 = sphi 0, %s57
      %s74 = sphi 0, %s58
      %s80 = sphi 0, %s82
      %s83 = sphi 0, %s80
      %s84 = sphi 0, %s83
      %s100 = sphi 0, %s84
      %s108 = sphi 0, %s110
      %s111 = sphi 0, %s108
      %s112 = sphi 0, %s111
      %s128 = sphi 0, %s112
      %s136 = sphi 0, %s138
      %s139 = sphi 0, %s136
      %s140 = sphi 0, %s139
      %s156 = sphi 0, %s140
      %s164 = sphi 0, %s166
      %s167 = sphi 0, %s164
      %s168 = sphi 0, %s167
      %s184 = sphi 0, %s168
    $region4: #{tpu_custom_call.1} parent=1 // loop_header_branch
      %24 = sbr.rel (%p22) target = $region8
    $region5: #{tpu_custom_call.1} parent=1 // loop_body
      %s26 = ssub.s32 %s21, 1
      %s27 = ssub.s32 %s21, 2
      %s37 = sadd.s32 1, %s30
      %p38 = scmp.ge.s32.totalorder %s37, 1
      %s39 = scalar_select %p38, 0, %s37
      %s40 = sadd.s32 1, %s29
      %s41 = scalar_select %p38, %s40, %s29
      %p42 = scmp.ge.s32.totalorder %s41, 1
      %s43 = scalar_select %p42, 0, %s41
      %s44 = sadd.s32 1, %s28
      %s45 = scalar_select %p42, %s44, %s28
      %p46 = scmp.ge.s32.totalorder %s45, 2
      %s47 = scalar_select %p46, 0, %s45
      %s48 = ssub.s32 %s28, %s47
      %s49 = ssub.s32 %s29, %s43
      %s50 = sor.u32 %s48, %s49
      %s51 = ssub.s32 %s30, %s39
      %s52 = sor.u32 %s50, %s51
      %p53 = scmp.eq.s32.totalorder %s52, 0
      %s55 = sadd.s32 %s54, 1
      %s56 = scalar_select %p53, %s54, %s55
      %p59 = pneg %p53
      %p60 = scmp.eq.s32.totalorder %s21, 1
      %p61 = por %p59, %p60
      %p62 = scmp.ne.s32.totalorder %s54, %s57
      %p63 = scmp.eq.s32.totalorder %s21, 0
      %p64 = por %p62, %p63
      %p65 = scmp.ne.s32.totalorder %s54, %s57
      %p66 = scmp.eq.s32.totalorder %s26, 1
      %p67 = por %p65, %p66
      %p68 = scmp.ne.s32.totalorder %s57, %s58
      %p69 = scmp.eq.s32.totalorder %s26, 0
      %p70 = por %p68, %p69
      %p71 = scmp.ne.s32.totalorder %s57, %s58
      %p72 = scmp.eq.s32.totalorder %s27, 1
      %p73 = por %p71, %p72
      %p75 = scmp.ne.s32.totalorder %s58, %s74
      %p76 = scmp.eq.s32.totalorder %s27, 0
      %p77 = por %p75, %p76
      %s78 = ssub.s32 %s30, %s39
      %p79 = scmp.eq.s32.totalorder %s78, 0
      %s81 = sadd.s32 %s80, 1
      %s82 = scalar_select %p79, %s80, %s81
      %p85 = pneg %p79
      %p86 = scmp.eq.s32.totalorder %s21, 1
      %p87 = por %p85, %p86
      %p88 = scmp.ne.s32.totalorder %s80, %s83
      %p89 = scmp.eq.s32.totalorder %s21, 0
      %p90 = por %p88, %p89
      %p91 = scmp.ne.s32.totalorder %s80, %s83
      %p92 = scmp.eq.s32.totalorder %s26, 1
      %p93 = por %p91, %p92
      %p94 = scmp.ne.s32.totalorder %s83, %s84
      %p95 = scmp.eq.s32.totalorder %s26, 0
      %p96 = por %p94, %p95
      %p97 = scmp.ne.s32.totalorder %s83, %s84
      %p98 = scmp.eq.s32.totalorder %s27, 1
      %p99 = por %p97, %p98
      %p101 = scmp.ne.s32.totalorder %s84, %s100
      %p102 = scmp.eq.s32.totalorder %s27, 0
      %p103 = por %p101, %p102
      %s104 = ssub.s32 %s28, %s47
      %s105 = ssub.s32 %s29, %s43
      %s106 = sor.u32 %s104, %s105
      %p107 = scmp.eq.s32.totalorder %s106, 0
      %s109 = sadd.s32 %s108, 1
      %s110 = scalar_select %p107, %s108, %s109
      %p113 = pneg %p107
      %p114 = scmp.eq.s32.totalorder %s21, 1
      %p115 = por %p113, %p114
      %p116 = scmp.ne.s32.totalorder %s108, %s111
      %p117 = scmp.eq.s32.totalorder %s21, 0
      %p118 = por %p116, %p117
      %p119 = scmp.ne.s32.totalorder %s108, %s111
      %p120 = scmp.eq.s32.totalorder %s26, 1
      %p121 = por %p119, %p120
      %p122 = scmp.ne.s32.totalorder %s111, %s112
      %p123 = scmp.eq.s32.totalorder %s26, 0
      %p124 = por %p122, %p123
      %p125 = scmp.ne.s32.totalorder %s111, %s112
      %p126 = scmp.eq.s32.totalorder %s27, 1
      %p127 = por %p125, %p126
      %p129 = scmp.ne.s32.totalorder %s112, %s128
      %p130 = scmp.eq.s32.totalorder %s27, 0
      %p131 = por %p129, %p130
      %s132 = ssub.s32 %s28, %s47
      %s133 = ssub.s32 %s29, %s43
      %s134 = sor.u32 %s132, %s133
      %p135 = scmp.eq.s32.totalorder %s134, 0
      %s137 = sadd.s32 %s136, 1
      %s138 = scalar_select %p135, %s136, %s137
      %p141 = pneg %p135
      %p142 = scmp.eq.s32.totalorder %s21, 1
      %p143 = por %p141, %p142
      %p144 = scmp.ne.s32.totalorder %s136, %s139
      %p145 = scmp.eq.s32.totalorder %s21, 0
      %p146 = por %p144, %p145
      %p147 = scmp.ne.s32.totalorder %s136, %s139
      %p148 = scmp.eq.s32.totalorder %s26, 1
      %p149 = por %p147, %p148
      %p150 = scmp.ne.s32.totalorder %s139, %s140
      %p151 = scmp.eq.s32.totalorder %s26, 0
      %p152 = por %p150, %p151
      %p153 = scmp.ne.s32.totalorder %s139, %s140
      %p154 = scmp.eq.s32.totalorder %s27, 1
      %p155 = por %p153, %p154
      %p157 = scmp.ne.s32.totalorder %s140, %s156
      %p158 = scmp.eq.s32.totalorder %s27, 0
      %p159 = por %p157, %p158
      %s160 = ssub.s32 %s28, %s47
      %s161 = ssub.s32 %s29, %s43
      %s162 = sor.u32 %s160, %s161
      %p163 = scmp.eq.s32.totalorder %s162, 0
      %s165 = sadd.s32 %s164, 1
      %s166 = scalar_select %p163, %s164, %s165
      %p169 = pneg %p163
      %p170 = scmp.eq.s32.totalorder %s21, 1
      %p171 = por %p169, %p170
      %p172 = scmp.ne.s32.totalorder %s164, %s167
      %p173 = scmp.eq.s32.totalorder %s21, 0
      %p174 = por %p172, %p173
      %p175 = scmp.ne.s32.totalorder %s164, %s167
      %p176 = scmp.eq.s32.totalorder %s26, 1
      %p177 = por %p175, %p176
      %p178 = scmp.ne.s32.totalorder %s167, %s168
      %p179 = scmp.eq.s32.totalorder %s26, 0
      %p180 = por %p178, %p179
      %p181 = scmp.ne.s32.totalorder %s167, %s168
      %p182 = scmp.eq.s32.totalorder %s27, 1
      %p183 = por %p181, %p182
      %p185 = scmp.ne.s32.totalorder %s168, %s184
      %p186 = scmp.eq.s32.totalorder %s27, 0
      %p187 = por %p185, %p186
      %p188 = scmp.le.s32.totalorder 1, %s21
      %p189 = scmp.lt.s32.totalorder %s21, 3
      %p190 = pnand %p188, %p189
      %p191 = pneg %p190
      // Predicated region
      $region9: #{tpu_custom_call.1} parent=5 // pred_check
        _
      $region10: #{tpu_custom_call.1} parent=5 // pred_check_branch
        %193 = sbr.rel (%p190) target = $region12
      $region11: #{tpu_custom_call.1} parent=5 // pred_region
        %s194 = ssub.s32 %s21, 1
        // Predicated region
        $region13: #{tpu_custom_call.1} parent=11 // pred_check
          %p195 = pneg %p96
        $region14: #{tpu_custom_call.1} parent=11 // pred_check_branch
          %197 = sbr.rel (%p195) target = $region16
        $region15: #{tpu_custom_call.1} parent=11 // pred_region
          %s198 = smul.u32 4, %s33
          %s200 = ssub.s32 512, 512
          %201 = vsyncadd [#allocation7], %s200
          %s202 = smul.addr %s198, 128
          %s203 = scalar_lea.hbm %s1, %s202
          %s204 = sshll.u32 [#allocation6], 4
          %s205 = int_to_ptr.vmem [resolvable:$true] %s204
          %210 = dma.hbm_to_vmem [thread:$0]  %s203, 512, %s205, [#allocation7], 128, 128, 8
        $region16: #{tpu_custom_call.1} parent=11 // pred_fallthru
          _
      $region12: #{tpu_custom_call.1} parent=5 // pred_fallthru
        _
      %p211 = scmp.lt.s32.totalorder %s21, 2
      // Predicated region
      $region17: #{tpu_custom_call.1} parent=5 // pred_check
        %p212 = pneg %p211
      $region18: #{tpu_custom_call.1} parent=5 // pred_check_branch
        %214 = sbr.rel (%p212) target = $region20
      $region19: #{tpu_custom_call.1} parent=5 // pred_region
        // Predicated region
        $region21: #{tpu_custom_call.1} parent=19 // pred_check
          %p215 = pneg %p64
        $region22: #{tpu_custom_call.1} parent=19 // pred_check_branch
          %217 = sbr.rel (%p215) target = $region24
        $region23: #{tpu_custom_call.1} parent=19 // pred_region
          %s218 = sand.u32 %s54, 1
          %s219 = scalar_lea.sflag [#allocation4], %s218
          %s220 = sand.u32 %s54, 1
          %s221 = smul.addr %s220, 8
          %s222 = scalar_lea.vmem [#allocation3], %s221
          %s224 = ssub.s32 128, 128
          %225 = vsyncadd %s219, %s224
          %s226 = sadd.s32 %s30, %s29
          %s227 = sadd.s32 %s226, %s28
          %s228 = smul.addr %s227, 128
          %s229 = scalar_lea.hbm %s0, %s228
          %s231 = sshll.u32 %s222, 4
          %s232 = int_to_ptr.vmem [resolvable:$true] %s231
          %234 = dma.hbm_to_vmem [thread:$0]  %s229, 128, %s232, %s219
        $region24: #{tpu_custom_call.1} parent=19 // pred_fallthru
          _
      $region20: #{tpu_custom_call.1} parent=5 // pred_fallthru
        _
      %p235 = scmp.le.s32.totalorder 1, %s21
      %p236 = scmp.lt.s32.totalorder %s21, 3
      %p237 = pnand %p235, %p236
      %p238 = pneg %p237
      // Predicated region
      $region25: #{tpu_custom_call.1} parent=5 // pred_check
        _
      $region26: #{tpu_custom_call.1} parent=5 // pred_check_branch
        %240 = sbr.rel (%p237) target = $region28
      $region27: #{tpu_custom_call.1} parent=5 // pred_region
        %s241 = ssub.s32 %s21, 1
        %s242 = sand.u32 %s57, 1
        %s243 = scalar_lea.sflag [#allocation4], %s242
        %s244 = sand.u32 %s57, 1
        %s245 = smul.addr %s244, 8
        %s246 = scalar_lea.vmem [#allocation3], %s245
        // Predicated region
        $region29: #{tpu_custom_call.1} parent=27 // pred_check
          %p247 = pneg %p70
        $region30: #{tpu_custom_call.1} parent=27 // pred_check_branch
          %249 = sbr.rel (%p247) target = $region32
        $region31: #{tpu_custom_call.1} parent=27 // pred_region
          %250 = dma.done %s243, 128
        $region32: #{tpu_custom_call.1} parent=27 // pred_fallthru
          _
        // Predicated region
        $region33: #{tpu_custom_call.1} parent=27 // pred_check
          %p251 = pneg %p96
        $region34: #{tpu_custom_call.1} parent=27 // pred_check_branch
          %253 = sbr.rel (%p251) target = $region36
        $region35: #{tpu_custom_call.1} parent=27 // pred_region
          %254 = dma.done [#allocation7], 512
        $region36: #{tpu_custom_call.1} parent=27 // pred_fallthru
          _
        %s255 = sand.u32 %s57, 1
        %s256 = scalar_lea.sflag [#allocation4], %s255
        %s257 = sand.u32 %s57, 1
        %s258 = smul.addr %s257, 8
        %s259 = scalar_lea.vmem [#allocation3], %s258
        %p260 = pneg %p70
        %p261 = pneg %p67
        %p262 = pneg %p96
        %p263 = pneg %p93
        %p264 = pneg %p124
        %p265 = pneg %p121
        %s266 = sand.u32 %s111, 1
        %s267 = scalar_lea.sflag [#allocation5], %s266
        %s268 = sand.u32 %s111, 1
        %s269 = smul.addr %s268, 32
        %s270 = scalar_lea.vmem [#allocation8], %s269
        %p271 = pneg %p152
        %p272 = pneg %p149
        %s273 = sand.u32 %s26, 1
        %s274 = scalar_lea.sflag [#allocation10], %s273
        %s275 = sand.u32 %s139, 1
        %s276 = smul.addr %s275, 32
        %s277 = scalar_lea.vmem [#allocation9], %s276
        %p278 = pneg %p180
        %p279 = pneg %p177
        %s280 = sand.u32 %s26, 1
        %s281 = scalar_lea.sflag [#allocation10], %s280
        %s282 = sand.u32 %s167, 1
        %s283 = smul.addr %s282, 32
        %s284 = scalar_lea.vmem [#allocation11], %s283
        %s285 = smul.u32 4, %s33
        %p286 = scmp.eq.s32.totalorder %s33, 0
        // Predicated region
        $region37: #{tpu_custom_call.1} parent=27 // pred_check
          %p287 = pneg %p286
        $region38: #{tpu_custom_call.1} parent=27 // pred_check_branch
          %289 = sbr.rel (%p287) target = $region40
        $region39: #{tpu_custom_call.1} parent=27 // pred_region
          %vm290 = vcmask 785408
          %291 = vst.msk [vmem:[#allocation2] sm:$0xff] %vm290, 0.0
        $region40: #{tpu_custom_call.1} parent=27 // pred_fallthru
          _
        %v292 = vld [vmem:[#allocation2] sm:$0xff]
        %v293 = vld [vmem:[%s246] sm:$0xff]
        %v294 = vld [vmem:[#allocation6] sm:$0xff]
        %v295 = vld [vmem:[#allocation6 + $0x8] sm:$0xff]
        %v296 = vld [vmem:[#allocation6 + $0x10] sm:$0xff]
        %v297 = vld [vmem:[#allocation6 + $0x18] sm:$0xff]
        %vm298 = vcmask 261120
        %v300 = vsel %vm298, %v293, 0
        %302 = vmatprep.subr.mxu0 0.0
        %303 = vmatpush1.msra.mxu0 %v294
        %304 = vmatprep.subr.mxu0 0.0
        %305 = vmatpush1.msra.mxu0 %v295
        %306 = vmatprep.subr.mxu0 0.0
        %307 = vmatpush1.msra.mxu0 %v296
        %308 = vmatprep.subr.mxu0 0.0
        %309 = vmatpush1.msra.mxu0 %v297
        %310 = vmatprep.subr.mxu0 0.0
        %311 = vmatpush1.msra.mxu0 0.0
        %312 = vmatprep.subr.mxu0 0.0
        %313 = vmatpush1.msra.mxu0 0.0
        %314 = vmatprep.subr.mxu0 0.0
        %315 = vmatpush1.msra.mxu0 0.0
        %316 = vmatprep.subr.mxu0 0.0
        %317 = vmatpush1.msra.mxu0 0.0
        %318 = vmatprep.subr.mxu0 0.0
        %319 = vmatpush1.msra.mxu0 0.0
        %320 = vmatprep.subr.mxu0 0.0
        %321 = vmatpush1.msra.mxu0 0.0
        %322 = vmatprep.subr.mxu0 0.0
        %323 = vmatpush1.msra.mxu0 0.0
        %324 = vmatprep.subr.mxu0 0.0
        %325 = vmatpush1.msra.mxu0 0.0
        %326 = vmatprep.subr.mxu0 0.0
        %327 = vmatpush1.msra.mxu0 0.0
        %328 = vmatprep.subr.mxu0 0.0
        %329 = vmatpush1.msra.mxu0 0.0
        %330 = vmatprep.subr.mxu0 0.0
        %331 = vmatpush1.msra.mxu0 0.0
        %332 = vmatprep.subr.mxu0 0.0
        %333 = vmatpush1.msra.mxu0 0.0
        %334 = vmatprep.subr.mxu0 0.0
        %335 = vmatpush1.msra.mxu0 0.0
        %336 = vmatprep.subr.mxu0 0.0
        %337 = vmatpush1.msra.mxu0 0.0
        %338 = vmatprep.subr.mxu0 0.0
        %339 = vmatpush1.msra.mxu0 0.0
        %340 = vmatprep.subr.mxu0 0.0
        %341 = vmatpush1.msra.mxu0 0.0
        %342 = vmatprep.subr.mxu0 0.0
        %343 = vmatpush1.msra.mxu0 0.0
        %344 = vmatprep.subr.mxu0 0.0
        %345 = vmatpush1.msra.mxu0 0.0
        %346 = vmatprep.subr.mxu0 0.0
        %347 = vmatpush1.msra.mxu0 0.0
        %348 = vmatprep.subr.mxu0 0.0
        %349 = vmatpush1.msra.mxu0 0.0
        %350 = vmatprep.subr.mxu0 0.0
        %351 = vmatpush1.msra.mxu0 0.0
        %352 = vmatprep.subr.mxu0 0.0
        %353 = vmatpush1.msra.mxu0 0.0
        %354 = vmatprep.subr.mxu0 0.0
        %355 = vmatpush1.msra.mxu0 0.0
        %356 = vmatprep.subr.mxu0 0.0
        %357 = vmatpush1.msra.mxu0 0.0
        %358 = vmatprep.subr.mxu0 0.0
        %359 = vmatpush1.msra.mxu0 0.0
        %360 = vmatprep.subr.mxu0 0.0
        %361 = vmatpush1.msra.mxu0 0.0
        %362 = vmatprep.subr.mxu0 0.0
        %363 = vmatpush1.msra.mxu0 0.0
        %364 = vmatprep.subr.mxu0 0.0
        %365 = vmatpush1.msra.mxu0 0.0
        %366 = vmatprep.mubr.f32.mxu0 0.0
        %367 = vmatmul.mubr.f32.gmra.mrb[0].mxu0 %v300
        %v368 = vpop.f32.mrb[0].mxu0
        %v369 = vadd.f32 0.0, %v368
        %v370 = vpop.f32.mrb[0].mxu0
        %371 = vdwg.mxu0
        %v372 = vadd.f32 %v292, %v369
        %vm373 = vcmask 785408
        %374 = vst.msk [vmem:[#allocation2] sm:$0xff] %vm373, %v372
        // Predicated region
        $region41: #{tpu_custom_call.1} parent=27 // pred_check
          %p375 = pneg %p286
        $region42: #{tpu_custom_call.1} parent=27 // pred_check_branch
          %377 = sbr.rel (%p375) target = $region44
        $region43: #{tpu_custom_call.1} parent=27 // pred_region
          %v378 = vld [vmem:[#allocation2] sm:$0xff]
          %vm379 = vcmask 64512
          %380 = vst.msk [vmem:[%s270] sm:$0xff] %vm379, %v378
          %382 = vrot.lane.b32.xlu0 %v378, 96
          %v383 = vpop.permute.xlu0 %382
          %385 = vst.msk [vmem:[%s277] sm:$0xff] %vm379, %v383
          %386 = vrot.lane.b32.xlu0 %v378, 64
          %v387 = vpop.permute.xlu0 %386
          %389 = vst.msk [vmem:[%s284] sm:$0xff] %vm379, %v387
          %390 = vrot.lane.b32.xlu0 %v378, 120
          %v391 = vpop.permute.xlu0 %390
          %s393 = scalar_lea.vmem %s270, 8 [#allocation8]
          %394 = vst.msk [vmem:[%s393] sm:$0xff] %vm379, %v391
          %395 = vrot.lane.b32.xlu0 %v378, 88
          %v396 = vpop.permute.xlu0 %395
          %s398 = scalar_lea.vmem %s277, 8 [#allocation9]
          %399 = vst.msk [vmem:[%s398] sm:$0xff] %vm379, %v396
          %400 = vrot.lane.b32.xlu0 %v378, 56
          %v401 = vpop.permute.xlu0 %400
          %s403 = scalar_lea.vmem %s284, 8 [#allocation11]
          %404 = vst.msk [vmem:[%s403] sm:$0xff] %vm379, %v401
          %405 = vrot.lane.b32.xlu0 %v378, 112
          %v406 = vpop.permute.xlu0 %405
          %s408 = scalar_lea.vmem %s270, 16 [#allocation8]
          %409 = vst.msk [vmem:[%s408] sm:$0xff] %vm379, %v406
          %410 = vrot.lane.b32.xlu0 %v378, 80
          %v411 = vpop.permute.xlu0 %410
          %s413 = scalar_lea.vmem %s277, 16 [#allocation9]
          %414 = vst.msk [vmem:[%s413] sm:$0xff] %vm379, %v411
          %415 = vrot.lane.b32.xlu0 %v378, 48
          %v416 = vpop.permute.xlu0 %415
          %s418 = scalar_lea.vmem %s284, 16 [#allocation11]
          %419 = vst.msk [vmem:[%s418] sm:$0xff] %vm379, %v416
          %420 = vrot.lane.b32.xlu0 %v378, 104
          %v421 = vpop.permute.xlu0 %420
          %s423 = scalar_lea.vmem %s270, 24 [#allocation8]
          %424 = vst.msk [vmem:[%s423] sm:$0xff] %vm379, %v421
          %425 = vrot.lane.b32.xlu0 %v378, 72
          %v426 = vpop.permute.xlu0 %425
          %s428 = scalar_lea.vmem %s277, 24 [#allocation9]
          %429 = vst.msk [vmem:[%s428] sm:$0xff] %vm379, %v426
          %430 = vrot.lane.b32.xlu0 %v378, 40
          %v431 = vpop.permute.xlu0 %430
          %s433 = scalar_lea.vmem %s284, 24 [#allocation11]
          %434 = vst.msk [vmem:[%s433] sm:$0xff] %vm379, %v431
        $region44: #{tpu_custom_call.1} parent=27 // pred_fallthru
          _
        %s435 = sand.u32 %s111, 1
        %s436 = scalar_lea.sflag [#allocation5], %s435
        %s437 = sand.u32 %s111, 1
        %s438 = smul.addr %s437, 32
        %s439 = scalar_lea.vmem [#allocation8], %s438
        %s440 = sand.u32 %s26, 1
        %s441 = scalar_lea.sflag [#allocation10], %s440
        %s442 = sand.u32 %s139, 1
        %s443 = smul.addr %s442, 32
        %s444 = scalar_lea.vmem [#allocation9], %s443
        %s445 = sand.u32 %s26, 1
        %s446 = scalar_lea.sflag [#allocation10], %s445
        %s447 = sand.u32 %s167, 1
        %s448 = smul.addr %s447, 32
        %s449 = scalar_lea.vmem [#allocation11], %s448
        // Predicated region
        $region45: #{tpu_custom_call.1} parent=27 // pred_check
          %p450 = pneg %p121
        $region46: #{tpu_custom_call.1} parent=27 // pred_check_branch
          %452 = sbr.rel (%p450) target = $region48
        $region47: #{tpu_custom_call.1} parent=27 // pred_region
          %s454 = ssub.s32 512, 512
          %455 = vsyncadd %s436, %s454
          %s456 = smul.addr %s31, 4
          %s457 = sadd.s32 %s32, %s456
          %s458 = smul.addr %s457, 128
          %s459 = scalar_lea.hbm %s2, %s458
          %s460 = sshll.u32 %s439, 4
          %s461 = int_to_ptr.vmem [resolvable:$true] %s460
          %466 = dma.vmem_to_hbm [thread:$0]  %s461, 512, %s459, %s436, 128, 128, 8
        $region48: #{tpu_custom_call.1} parent=27 // pred_fallthru
          _
        // Predicated region
        $region49: #{tpu_custom_call.1} parent=27 // pred_check
          %p467 = pneg %p149
        $region50: #{tpu_custom_call.1} parent=27 // pred_check_branch
          %469 = sbr.rel (%p467) target = $region52
        $region51: #{tpu_custom_call.1} parent=27 // pred_region
          %s471 = ssub.s32 512, 512
          %472 = vsyncadd %s441, %s471
          %s473 = smul.addr %s31, 4
          %s474 = sadd.s32 %s32, %s473
          %s475 = smul.addr %s474, 128
          %s476 = scalar_lea.hbm %s3, %s475
          %s477 = sshll.u32 %s444, 4
          %s478 = int_to_ptr.vmem [resolvable:$true] %s477
          %483 = dma.vmem_to_hbm [thread:$0]  %s478, 512, %s476, %s441, 128, 128, 8
        $region52: #{tpu_custom_call.1} parent=27 // pred_fallthru
          _
        // Predicated region
        $region53: #{tpu_custom_call.1} parent=27 // pred_check
          %p484 = pneg %p177
        $region54: #{tpu_custom_call.1} parent=27 // pred_check_branch
          %486 = sbr.rel (%p484) target = $region56
        $region55: #{tpu_custom_call.1} parent=27 // pred_region
          %s488 = ssub.s32 512, 512
          %489 = vsyncadd %s446, %s488
          %s490 = smul.addr %s31, 4
          %s491 = sadd.s32 %s32, %s490
          %s492 = smul.addr %s491, 128
          %s493 = scalar_lea.hbm %s4, %s492
          %s494 = sshll.u32 %s449, 4
          %s495 = int_to_ptr.vmem [resolvable:$true] %s494
          %500 = dma.vmem_to_hbm [thread:$0]  %s495, 512, %s493, %s446, 128, 128, 8
        $region56: #{tpu_custom_call.1} parent=27 // pred_fallthru
          _
      $region28: #{tpu_custom_call.1} parent=5 // pred_fallthru
        _
      %p501 = scmp.le.s32.totalorder 2, %s21
      // Predicated region
      $region57: #{tpu_custom_call.1} parent=5 // pred_check
        %p502 = pneg %p501
      $region58: #{tpu_custom_call.1} parent=5 // pred_check_branch
        %504 = sbr.rel (%p502) target = $region60
      $region59: #{tpu_custom_call.1} parent=5 // pred_region
        %s505 = ssub.s32 %s21, 2
        // Predicated region
        $region61: #{tpu_custom_call.1} parent=59 // pred_check
          %p506 = pneg %p127
        $region62: #{tpu_custom_call.1} parent=59 // pred_check_branch
          %508 = sbr.rel (%p506) target = $region64
        $region63: #{tpu_custom_call.1} parent=59 // pred_region
          %s509 = sand.u32 %s112, 1
          %s510 = scalar_lea.sflag [#allocation5], %s509
          %s511 = sand.u32 %s112, 1
          %s512 = smul.addr %s511, 32
          %s513 = scalar_lea.vmem [#allocation8], %s512
          %514 = dma.done %s510, 512
        $region64: #{tpu_custom_call.1} parent=59 // pred_fallthru
          _
        // Predicated region
        $region65: #{tpu_custom_call.1} parent=59 // pred_check
          %p515 = pneg %p155
        $region66: #{tpu_custom_call.1} parent=59 // pred_check_branch
          %517 = sbr.rel (%p515) target = $region68
        $region67: #{tpu_custom_call.1} parent=59 // pred_region
          %s518 = sand.u32 %s27, 1
          %s519 = scalar_lea.sflag [#allocation10], %s518
          %s520 = sand.u32 %s140, 1
          %s521 = smul.addr %s520, 32
          %s522 = scalar_lea.vmem [#allocation9], %s521
          %523 = dma.done %s519, 512
        $region68: #{tpu_custom_call.1} parent=59 // pred_fallthru
          _
        // Predicated region
        $region69: #{tpu_custom_call.1} parent=59 // pred_check
          %p524 = pneg %p183
        $region70: #{tpu_custom_call.1} parent=59 // pred_check_branch
          %526 = sbr.rel (%p524) target = $region72
        $region71: #{tpu_custom_call.1} parent=59 // pred_region
          %s527 = sand.u32 %s27, 1
          %s528 = scalar_lea.sflag [#allocation10], %s527
          %s529 = sand.u32 %s168, 1
          %s530 = smul.addr %s529, 32
          %s531 = scalar_lea.vmem [#allocation11], %s530
          %532 = dma.done %s528, 512
        $region72: #{tpu_custom_call.1} parent=59 // pred_fallthru
          _
      $region60: #{tpu_custom_call.1} parent=5 // pred_fallthru
        _
    $region6: #{tpu_custom_call.1} parent=1 // loop_footer
      %s25 = sadd.s32 1, %s21
    $region7: #{tpu_custom_call.1} parent=1 // loop_footer_branch
      %20 = sbr.rel target = $region3
    $region8: #{tpu_custom_call.1} parent=1 // loop_exit
      _
    %533 = vsyncpa [#allocation4], 1
    %s534 = scalar_lea.sflag [#allocation4], 1
    %535 = vsyncpa %s534, 1
    %536 = vsyncpa [#allocation7], 1
    %537 = vsyncpa [#allocation5], 1
    %s538 = scalar_lea.sflag [#allocation5], 1
    %539 = vsyncpa %s538, 1
    %540 = vsyncpa [#allocation10], 1
    %s541 = scalar_lea.sflag [#allocation10], 1
    %542 = vsyncpa %s541, 1

</llo_original>
